<compile_context>
chip_gen: v6e
topology: v6e:2x2x1
jax: 0.10.0
libtpu: 0.0.40
codegen_flags: <defaults>
</compile_context>

<pallas_src>
import math

import jax
import jax.numpy as jnp
from jax.experimental import pallas as pl
from jax.experimental.pallas import tpu as pltpu


# -----------------------------------------------------------------------------
# Parameter construction (deterministic, plain JAX "glue")
# -----------------------------------------------------------------------------
def fixed_embedding_table(c_in, d_model):
    """Sinusoidal table identical to FixedEmbedding.__init__ (requires even d_model)."""
    assert d_model % 2 == 0, "FixedEmbedding requires an even d_model"
    pos = jnp.arange(c_in, dtype=jnp.float32)[:, None]                       # (c_in, 1)
    div = jnp.exp(
        jnp.arange(0, d_model, 2, dtype=jnp.float32) * (-math.log(10000.0) / d_model)
    )                                                                        # (d_model//2,)
    w = jnp.zeros((c_in, d_model), dtype=jnp.float32)
    w = w.at[:, 0::2].set(jnp.sin(pos * div))
    w = w.at[:, 1::2].set(jnp.cos(pos * div))
    return w


def make_token_conv_weight(key, c_in, d_model):
    """Conv1d(c_in, d_model, k=3, bias=False) weight, kaiming_normal fan_in/leaky_relu."""
    fan_in = c_in * 3
    negative_slope = 0.01  # torch default for 'leaky_relu'
    gain = math.sqrt(2.0 / (1.0 + negative_slope ** 2))
    std = gain / math.sqrt(fan_in)
    # OIH layout, same as torch: (d_model, c_in, 3)
    return std * jax.random.normal(key, (d_model, c_in, 3), dtype=jnp.float32)


# -----------------------------------------------------------------------------
# Pallas kernel
# -----------------------------------------------------------------------------
def _embed_kernel(win_ref, idx_ref, w_ref, tab_ref, o_ref):
    # win_ref: (TM, 3*c_in)  compute_dtype  circular-conv window rows
    # idx_ref: (TM, 4)       int32          pre-offset indices into combined table
    # w_ref:   (3*c_in, Dp)  compute_dtype  repacked conv weight (lane-dense cols)
    # tab_ref: (128, Dp)     compute_dtype  combined fixed-embedding table
    # o_ref:   (TM, Dp)      float32
    TM = o_ref.shape[0]
    TAB = tab_ref.shape[0]  # 128

    # Value embedding: circular conv as a single MXU matmul.
    conv = jnp.dot(win_ref[...], w_ref[...], preferred_element_type=jnp.float32)

    # Temporal embedding: one lane-dense multi-hot (4 ones/row) x combined table.
    idx = idx_ref[...]                                           # (TM, 4) int32
    iota = jax.lax.broadcasted_iota(jnp.int32, (TM, TAB), 1)     # (TM, 128)
    mh_dtype = tab_ref.dtype
    mh = (idx[:, 0][:, None] == iota).astype(mh_dtype)
    for j in range(1, 4):                                        # disjoint ranges -> safe sum
        mh = mh + (idx[:, j][:, None] == iota).astype(mh_dtype)
    temporal = jnp.dot(mh, tab_ref[...], preferred_element_type=jnp.float32)

    # TODO(synk): dropout (training-mode) omitted; inference identity.
    o_ref[...] = (conv + temporal).astype(o_ref.dtype)


# -----------------------------------------------------------------------------
# Wrapper
# -----------------------------------------------------------------------------
def data_embedding_wo_pos(x, x_mark, w_conv, hour_tab, wday_tab, day_tab, mon_tab,
                          *, row_tile=512, compute_dtype=jnp.float32):
    """Forward pass of DataEmbedding_wo_pos (embed_type='fixed', freq='h', inference).

    x       : (B, L, c_in) float32
    x_mark  : (B, L, 4)    int    [month, day, weekday, hour]
    returns : (B, L, d_model) float32

    compute_dtype: set to jnp.bfloat16 on v6e/v7x to halve HBM/VMEM traffic for the
    matmul operands (f32 accumulation preserved). Default float32 (exact, v5e-safe).
    """
    B, L, c_in = x.shape
    d_model = w_conv.shape[0]
    rows = B * L

    # --- circular conv window built in the wrapper (no in-kernel lane concat) ---
    x_prev = jnp.roll(x, 1, axis=1)    # x[t-1]  (circular per sequence)
    x_next = jnp.roll(x, -1, axis=1)   # x[t+1]
    window = jnp.concatenate([x_prev, x, x_next], axis=-1).reshape(rows, 3 * c_in)
    window = window.astype(compute_dtype)

    # --- repack conv weight (OIH) -> (3*c_in, d_model): w_mat[k*c_in + c, d] ---
    w_mat = jnp.transpose(w_conv, (2, 1, 0)).reshape(3 * c_in, d_model)

    # --- fuse the 4 fixed-embedding tables into one 128-row table ---
    sizes = (hour_tab.shape[0], wday_tab.shape[0], day_tab.shape[0], mon_tab.shape[0])
    tab = jnp.concatenate([hour_tab, wday_tab, day_tab, mon_tab], axis=0)  # (76, d_model)
    TAB = 128
    tab = jnp.pad(tab, ((0, TAB - tab.shape[0]), (0, 0)))

    offs = (0,
            sizes[0],
            sizes[0] + sizes[1],
            sizes[0] + sizes[1] + sizes[2])
    xm = x_mark.reshape(rows, 4).astype(jnp.int32)
    idx = jnp.stack(
        [xm[:, 3] + offs[0],     # hour_embed(x[:, :, 3])
         xm[:, 2] + offs[1],     # weekday_embed(x[:, :, 2])
         xm[:, 1] + offs[2],     # day_embed(x[:, :, 1])
         xm[:, 0] + offs[3]],    # month_embed(x[:, :, 0])
        axis=-1)                 # (rows, 4) pre-offset indices

    # --- lane-dense output: pad d_model up to a multiple of 128 ---
    d_pad = ((d_model + 127) // 128) * 128
    if d_pad != d_model:
        w_mat = jnp.pad(w_mat, ((0, 0), (0, d_pad - d_model)))
        tab = jnp.pad(tab, ((0, 0), (0, d_pad - d_model)))
    w_mat = w_mat.astype(compute_dtype)
    tab = tab.astype(compute_dtype)

    # --- row tiling: (8,128)-aligned row tiles, grid over B*L rows ---
    tm = min(row_tile, ((rows + 7) // 8) * 8)
    rows_padded = ((rows + tm - 1) // tm) * tm
    if rows_padded != rows:
        window = jnp.pad(window, ((0, rows_padded - rows), (0, 0)))
        idx = jnp.pad(idx, ((0, rows_padded - rows), (0, 0)))
    grid = (rows_padded // tm,)

    cost = pl.CostEstimate(
        flops=2 * rows_padded * (3 * c_in + TAB) * d_pad,
        transcendentals=0,
        bytes_accessed=(rows_padded * (3 * c_in * window.dtype.itemsize
                                       + 4 * 4
                                       + d_pad * 4)
                        + (3 * c_in + TAB) * d_pad * w_mat.dtype.itemsize),
    )

    out = pl.pallas_call(
        _embed_kernel,
        out_shape=jax.ShapeDtypeStruct((rows_padded, d_pad), jnp.float32),
        grid_spec=pltpu.PrefetchScalarGridSpec(
            num_scalar_prefetch=0,
            grid=grid,
            in_specs=[
                pl.BlockSpec((tm, 3 * c_in), lambda i: (i, 0)),   # window rows
                pl.BlockSpec((tm, 4), lambda i: (i, 0)),          # pre-offset indices
                pl.BlockSpec((3 * c_in, d_pad), lambda i: (0, 0)),  # conv weight (resident)
                pl.BlockSpec((TAB, d_pad), lambda i: (0, 0)),       # combined table (resident)
            ],
            out_specs=pl.BlockSpec((tm, d_pad), lambda i: (i, 0)),
        ),
        compiler_params=pltpu.CompilerParams(
            dimension_semantics=("parallel",),
        ),
        cost_estimate=cost,
    )(window, idx, w_mat, tab)

    return out[:rows, :d_model].reshape(B, L, d_model)


# -----------------------------------------------------------------------------
# Pure-JAX reference (same math, no Pallas) for verification
# -----------------------------------------------------------------------------
def reference(x, x_mark, w_conv, hour_tab, wday_tab, day_tab, mon_tab):
    xt = jnp.transpose(x, (0, 2, 1))                                   # (B, c_in, L)
    xp = jnp.concatenate([xt[:, :, -1:], xt, xt[:, :, :1]], axis=-1)   # circular pad 1
    conv = jax.lax.conv_general_dilated(
        xp, w_conv, window_strides=(1,), padding="VALID",
        dimension_numbers=("NCH", "OIH", "NCH"))
    conv = jnp.transpose(conv, (0, 2, 1))                              # (B, L, d_model)
    temporal = (hour_tab[x_mark[..., 3]] + wday_tab[x_mark[..., 2]]
                + day_tab[x_mark[..., 1]] + mon_tab[x_mark[..., 0]])
    return conv + temporal


# -----------------------------------------------------------------------------
if __name__ == "__main__":
    B, L, c_in, d_model = 2, 8, 4, 32

    key = jax.random.PRNGKey(0)
    k_x, k_w, k_m = jax.random.split(key, 3)

    x = jax.random.normal(k_x, (B, L, c_in), dtype=jnp.float32)
    # time marks: [month (0..12), day (0..31), weekday (0..6), hour (0..23)]
    km0, km1, km2, km3 = jax.random.split(k_m, 4)
    x_mark = jnp.stack(
        [
            jax.random.randint(km0, (B, L), 0, 13),
            jax.random.randint(km1, (B, L), 0, 32),
            jax.random.randint(km2, (B, L), 0, 7),
            jax.random.randint(km3, (B, L), 0, 24),
        ],
        axis=-1,
    ).astype(jnp.int32)                                                # (B, L, 4)

    w_conv = make_token_conv_weight(k_w, c_in, d_model)                # (d_model, c_in, 3)
    hour_tab = fixed_embedding_table(24, d_model)
    wday_tab = fixed_embedding_table(7, d_model)
    day_tab = fixed_embedding_table(32, d_model)
    mon_tab = fixed_embedding_table(13, d_model)

    out = data_embedding_wo_pos(x, x_mark, w_conv, hour_tab, wday_tab, day_tab, mon_tab)
    out = jax.block_until_ready(out)

    ref = reference(x, x_mark, w_conv, hour_tab, wday_tab, day_tab, mon_tab)
    assert out.shape == (B, L, d_model)
    assert jnp.allclose(out, ref, atol=1e-5, rtol=1e-5), "mismatch vs pure-JAX reference"

    print("KERNEL_OK")
</pallas_src>

<mosaic_0001>
module attributes {stable_mosaic.version = 11 : i64} {
  func.func @_embed_kernel(%arg0: i32, %arg1: memref<16x12xf32, #tpu.memory_space<vmem>>, %arg2: memref<16x4xi32, #tpu.memory_space<vmem>>, %arg3: memref<12x128xf32, #tpu.memory_space<vmem>>, %arg4: memref<128x128xf32, #tpu.memory_space<vmem>>, %arg5: memref<16x128xf32, #tpu.memory_space<vmem>>) attributes {dimension_semantics = [#tpu.dimension_semantics<parallel>], iteration_bounds = array<i64: 1>, scalar_prefetch = 0 : i64, scratch_operands = 0 : i64, tpu.core_type = #tpu.core_type<tc>, window_params = [{transform_indices = @transform_0, window_bounds = array<i64: 16, 12>}, {transform_indices = @transform_1, window_bounds = array<i64: 16, 4>}, {pipeline_mode = #tpu.pipeline_mode<synchronous>, transform_indices = @transform_2, window_bounds = array<i64: 12, 128>}, {pipeline_mode = #tpu.pipeline_mode<synchronous>, transform_indices = @transform_3, window_bounds = array<i64: 128, 128>}, {transform_indices = @transform_4, window_bounds = array<i64: 16, 128>}]} {
    %c0 = arith.constant 0 : index
    %c0_0 = arith.constant 0 : index
    %0 = vector.load %arg1[%c0, %c0_0] : memref<16x12xf32, #tpu.memory_space<vmem>>, vector<16x12xf32>
    %c0_1 = arith.constant 0 : index
    %c0_2 = arith.constant 0 : index
    %1 = vector.load %arg3[%c0_1, %c0_2] : memref<12x128xf32, #tpu.memory_space<vmem>>, vector<12x128xf32>
    %cst = arith.constant dense<0.000000e+00> : vector<16x128xf32>
    %2 = tpu.matmul %0, %1, %cst {dimension_numbers = #tpu.dot_dimension_numbers<[1], [0], [0], [1], [0, 0, 1, 1], [], []>} : vector<16x12xf32>, vector<12x128xf32>, vector<16x128xf32> -> vector<16x128xf32>
    %c0_3 = arith.constant 0 : index
    %c0_4 = arith.constant 0 : index
    %3 = vector.load %arg2[%c0_3, %c0_4] : memref<16x4xi32, #tpu.memory_space<vmem>>, vector<16x4xi32>
    %4 = tpu.iota {dimensions = array<i32: 1>} : vector<16x128xi32>
    %5 = vector.extract_strided_slice %3 {offsets = [0, 0], sizes = [16, 1], strides = [1, 1]} : vector<16x4xi32> to vector<16x1xi32>
    %6 = vector.shape_cast %5 : vector<16x1xi32> to vector<16xi32>
    %7 = vector.shape_cast %6 : vector<16xi32> to vector<16x1xi32>
    %8 = vector.broadcast %7 : vector<16x1xi32> to vector<16x128xi32>
    %9 = arith.cmpi eq, %8, %4 : vector<16x128xi32>
    %10 = arith.extui %9 : vector<16x128xi1> to vector<16x128xi32>
    %11 = arith.sitofp %10 : vector<16x128xi32> to vector<16x128xf32>
    %12 = vector.extract_strided_slice %3 {offsets = [0, 1], sizes = [16, 1], strides = [1, 1]} : vector<16x4xi32> to vector<16x1xi32>
    %13 = vector.shape_cast %12 : vector<16x1xi32> to vector<16xi32>
    %14 = vector.shape_cast %13 : vector<16xi32> to vector<16x1xi32>
    %15 = vector.broadcast %14 : vector<16x1xi32> to vector<16x128xi32>
    %16 = arith.cmpi eq, %15, %4 : vector<16x128xi32>
    %17 = arith.extui %16 : vector<16x128xi1> to vector<16x128xi32>
    %18 = arith.sitofp %17 : vector<16x128xi32> to vector<16x128xf32>
    %19 = arith.addf %11, %18 : vector<16x128xf32>
    %20 = vector.extract_strided_slice %3 {offsets = [0, 2], sizes = [16, 1], strides = [1, 1]} : vector<16x4xi32> to vector<16x1xi32>
    %21 = vector.shape_cast %20 : vector<16x1xi32> to vector<16xi32>
    %22 = vector.shape_cast %21 : vector<16xi32> to vector<16x1xi32>
    %23 = vector.broadcast %22 : vector<16x1xi32> to vector<16x128xi32>
    %24 = arith.cmpi eq, %23, %4 : vector<16x128xi32>
    %25 = arith.extui %24 : vector<16x128xi1> to vector<16x128xi32>
    %26 = arith.sitofp %25 : vector<16x128xi32> to vector<16x128xf32>
    %27 = arith.addf %19, %26 : vector<16x128xf32>
    %28 = vector.extract_strided_slice %3 {offsets = [0, 3], sizes = [16, 1], strides = [1, 1]} : vector<16x4xi32> to vector<16x1xi32>
    %29 = vector.shape_cast %28 : vector<16x1xi32> to vector<16xi32>
    %30 = vector.shape_cast %29 : vector<16xi32> to vector<16x1xi32>
    %31 = vector.broadcast %30 : vector<16x1xi32> to vector<16x128xi32>
    %32 = arith.cmpi eq, %31, %4 : vector<16x128xi32>
    %33 = arith.extui %32 : vector<16x128xi1> to vector<16x128xi32>
    %34 = arith.sitofp %33 : vector<16x128xi32> to vector<16x128xf32>
    %35 = arith.addf %27, %34 : vector<16x128xf32>
    %c0_5 = arith.constant 0 : index
    %c0_6 = arith.constant 0 : index
    %36 = vector.load %arg4[%c0_5, %c0_6] : memref<128x128xf32, #tpu.memory_space<vmem>>, vector<128x128xf32>
    %cst_7 = arith.constant dense<0.000000e+00> : vector<16x128xf32>
    %37 = tpu.matmul %35, %36, %cst_7 {dimension_numbers = #tpu.dot_dimension_numbers<[1], [0], [0], [1], [0, 0, 1, 1], [], []>} : vector<16x128xf32>, vector<128x128xf32>, vector<16x128xf32> -> vector<16x128xf32>
    %38 = arith.addf %2, %37 : vector<16x128xf32>
    %c0_8 = arith.constant 0 : index
    %c0_9 = arith.constant 0 : index
    %39 = vector.load %arg5[%c0_8, %c0_9] : memref<16x128xf32, #tpu.memory_space<vmem>>, vector<16x128xf32>
    tpu.vector_store %arg5[%c0_8, %c0_9], %38 {strides = array<i32>} : memref<16x128xf32, #tpu.memory_space<vmem>>, vector<16x128xf32>,
    return
  }
  func.func @transform_0(%arg0: i32) -> (i32, i32) {
    %c0_i32 = arith.constant 0 : i32
    %c0_i32_0 = arith.constant 0 : i32
    return %arg0, %c0_i32 : i32, i32
  }
  func.func @transform_1(%arg0: i32) -> (i32, i32) {
    %c0_i32 = arith.constant 0 : i32
    %c0_i32_0 = arith.constant 0 : i32
    return %arg0, %c0_i32 : i32, i32
  }
  func.func @transform_2(%arg0: i32) -> (i32, i32) {
    %c0_i32 = arith.constant 0 : i32
    %c0_i32_0 = arith.constant 0 : i32
    %c0_i32_1 = arith.constant 0 : i32
    return %c0_i32, %c0_i32_0 : i32, i32
  }
  func.func @transform_3(%arg0: i32) -> (i32, i32) {
    %c0_i32 = arith.constant 0 : i32
    %c0_i32_0 = arith.constant 0 : i32
    %c0_i32_1 = arith.constant 0 : i32
    return %c0_i32, %c0_i32_0 : i32, i32
  }
  func.func @transform_4(%arg0: i32) -> (i32, i32) {
    %c0_i32 = arith.constant 0 : i32
    %c0_i32_0 = arith.constant 0 : i32
    return %arg0, %c0_i32 : i32, i32
  }
}

</mosaic_0001>

<llo_original>
// kernel: tpu_custom_call.1
$region0: #{tpu_custom_call.1}
  #allocation0 [shape = 'u32[]', space=smem, size = 0x4, offset = 0x4, fixed_abs, tag = 'smem constant byte address 0x4 - core index']
  #allocation1 [shape = 'u32[144,128]{1,0:T(1,128)}', space=vmem, size = 0x12000, scoped, tag = 'internal scratch']
  %s0 = inlined_call_operand.vmem [shape: f32[16,12], index: 0, kind: input, shape index: {}]
  %s1 = inlined_call_operand.vmem [shape: s32[16,4], index: 1, kind: input, shape index: {}]
  %s2 = inlined_call_operand.hbm [shape: f32[12,128], index: 2, kind: input, shape index: {}]
  %s3 = inlined_call_operand.hbm [shape: f32[128,128], index: 3, kind: input, shape index: {}]
  %s4 = inlined_call_operand.hbm [shape: f32[16,128], index: 4, kind: output, shape index: {}]
  %s5 = sld [smem:[#allocation0]]
  $region34: #{tpu_custom_call.1} parent=0
    _
  %s7 = ssub.s32 1, %s5
  %s8 = scalar_select 0, %s7, %s5
  $region1: #{tpu_custom_call.1} parent=0
    #allocation2 [shape = 'u8[8192]{0}', space=vmem, size = 0x2000, scoped, tag = 'input window, operand 2, single buffered']
    #allocation3 [shape = 's32[1]{0}', space=sflag, size = 0x4, scoped, tag = 'scoped memory for tpu_custom_call.1']
    #allocation4 [shape = 's32[1]{0}', space=sflag, size = 0x4, scoped, tag = 'scoped memory for tpu_custom_call.1']
    #allocation5 [shape = 'u8[65536]{0}', space=vmem, size = 0x10000, scoped, tag = 'input window, operand 3, single buffered']
    #allocation6 [shape = 's32[1]{0}', space=sflag, size = 0x4, scoped, tag = 'scoped memory for tpu_custom_call.1']
    #allocation7 [shape = 'u8[8192]{0}', space=vmem, size = 0x2000, scoped, tag = 'output window, operand 0, single buffered']
    %9 = vsyncpa [#allocation3], 0
    %10 = vsyncpa [#allocation6], 0
    %11 = vsyncpa [#allocation4], 0
    // Predicated region
    $region2: #{tpu_custom_call.1} parent=1 // pred_check
      _
    $region3: #{tpu_custom_call.1} parent=1 // pred_check_branch
      %13 = sbr.rel (0) target = $region5
    $region4: #{tpu_custom_call.1} parent=1 // pred_region
      _
    $region5: #{tpu_custom_call.1} parent=1 // pred_fallthru
      _
    // Predicated region
    $region6: #{tpu_custom_call.1} parent=1 // pred_check
      _
    $region7: #{tpu_custom_call.1} parent=1 // pred_check_branch
      %15 = sbr.rel (0) target = $region9
    $region8: #{tpu_custom_call.1} parent=1 // pred_region
      _
    $region9: #{tpu_custom_call.1} parent=1 // pred_fallthru
      _
    // Predicated region
    $region10: #{tpu_custom_call.1} parent=1 // pred_check
      _
    $region11: #{tpu_custom_call.1} parent=1 // pred_check_branch
      %17 = sbr.rel (0) target = $region13
    $region12: #{tpu_custom_call.1} parent=1 // pred_region
      %s19 = ssub.s32 256, 256
      %20 = vsyncadd [#allocation3], %s19
      %s21 = sshll.u32 [#allocation2], 4
      %s22 = int_to_ptr.vmem [resolvable:$true] %s21
      %27 = dma.hbm_to_vmem [thread:$0]  %s2, 256, %s22, [#allocation3], 128, 128, 8
    $region13: #{tpu_custom_call.1} parent=1 // pred_fallthru
      _
    // Predicated region
    $region14: #{tpu_custom_call.1} parent=1 // pred_check
      _
    $region15: #{tpu_custom_call.1} parent=1 // pred_check_branch
      %29 = sbr.rel (0) target = $region17
    $region16: #{tpu_custom_call.1} parent=1 // pred_region
      %s31 = ssub.s32 2048, 2048
      %32 = vsyncadd [#allocation6], %s31
      %s33 = sshll.u32 [#allocation5], 4
      %s34 = int_to_ptr.vmem [resolvable:$true] %s33
      %39 = dma.hbm_to_vmem [thread:$0]  %s3, 2048, %s34, [#allocation6], 128, 128, 8
    $region17: #{tpu_custom_call.1} parent=1 // pred_fallthru
      _
    // Predicated region
    $region18: #{tpu_custom_call.1} parent=1 // pred_check
      _
    $region19: #{tpu_custom_call.1} parent=1 // pred_check_branch
      %41 = sbr.rel (0) target = $region21
    $region20: #{tpu_custom_call.1} parent=1 // pred_region
      %42 = dma.done [#allocation3], 256
    $region21: #{tpu_custom_call.1} parent=1 // pred_fallthru
      _
    // Predicated region
    $region22: #{tpu_custom_call.1} parent=1 // pred_check
      _
    $region23: #{tpu_custom_call.1} parent=1 // pred_check_branch
      %44 = sbr.rel (0) target = $region25
    $region24: #{tpu_custom_call.1} parent=1 // pred_region
      %45 = dma.done [#allocation6], 2048
    $region25: #{tpu_custom_call.1} parent=1 // pred_fallthru
      _
    %v46 = vld [vmem:[%s0] sm:$0xff]
    %v47 = vld [vmem:[%s0 + $0x8] sm:$0xff]
    %v48 = vld [vmem:[#allocation2] sm:$0xff]
    %v49 = vld [vmem:[#allocation2 + $0x8] sm:$0xf]
    %v50 = vld [vmem:[%s1] sm:$0xff]
    %v51 = vld [vmem:[%s1 + $0x8] sm:$0xff]
    %v52 = vlaneseq
    %v53 = vand.u32 %v52, 127
    %54 = vset.pattern.permute.xlu0 0
    %55 = vperm.xlu0 %54, %v50
    %v56 = vpop.permute.xlu0 %55
    %57 = vset.pattern.permute.xlu0 0
    %58 = vperm.xlu0 %57, %v51
    %v59 = vpop.permute.xlu0 %58
    %vm60 = vcmp.eq.s32.totalorder %v56, %v53
    %vm61 = vcmp.eq.s32.totalorder %v59, %v53
    %v62 = vsel %vm60, 1, 0
    %v63 = vsel %vm61, 1, 0
    %v64 = vcvt.s32.f32 %v62
    %v65 = vcvt.s32.f32 %v63
    %66 = vset.pattern.permute.xlu0 1
    %67 = vperm.xlu0 %66, %v50
    %v68 = vpop.permute.xlu0 %67
    %69 = vset.pattern.permute.xlu0 1
    %70 = vperm.xlu0 %69, %v51
    %v71 = vpop.permute.xlu0 %70
    %vm72 = vcmp.eq.s32.totalorder %v68, %v53
    %vm73 = vcmp.eq.s32.totalorder %v71, %v53
    %v74 = vsel %vm72, 1, 0
    %v75 = vsel %vm73, 1, 0
    %v76 = vcvt.s32.f32 %v74
    %v77 = vcvt.s32.f32 %v75
    %v78 = vadd.f32 %v64, %v76
    %v79 = vadd.f32 %v65, %v77
    %80 = vset.pattern.permute.xlu0 2
    %81 = vperm.xlu0 %80, %v50
    %v82 = vpop.permute.xlu0 %81
    %83 = vset.pattern.permute.xlu0 2
    %84 = vperm.xlu0 %83, %v51
    %v85 = vpop.permute.xlu0 %84
    %vm86 = vcmp.eq.s32.totalorder %v82, %v53
    %vm87 = vcmp.eq.s32.totalorder %v85, %v53
    %v88 = vsel %vm86, 1, 0
    %v89 = vsel %vm87, 1, 0
    %v90 = vcvt.s32.f32 %v88
    %v91 = vcvt.s32.f32 %v89
    %v92 = vadd.f32 %v78, %v90
    %v93 = vadd.f32 %v79, %v91
    %94 = vset.pattern.permute.xlu0 3
    %95 = vperm.xlu0 %94, %v50
    %v96 = vpop.permute.xlu0 %95
    %97 = vset.pattern.permute.xlu0 3
    %98 = vperm.xlu0 %97, %v51
    %v99 = vpop.permute.xlu0 %98
    %vm100 = vcmp.eq.s32.totalorder %v96, %v53
    %vm101 = vcmp.eq.s32.totalorder %v99, %v53
    %v102 = vsel %vm100, 1, 0
    %v103 = vsel %vm101, 1, 0
    %v104 = vcvt.s32.f32 %v102
    %v105 = vcvt.s32.f32 %v103
    %v106 = vadd.f32 %v92, %v104
    %v107 = vadd.f32 %v93, %v105
    %v108 = vld [vmem:[#allocation5] sm:$0xff]
    %v109 = vld [vmem:[#allocation5 + $0x8] sm:$0xff]
    %v110 = vld [vmem:[#allocation5 + $0x10] sm:$0xff]
    %v111 = vld [vmem:[#allocation5 + $0x18] sm:$0xff]
    %v112 = vld [vmem:[#allocation5 + $0x20] sm:$0xff]
    %v113 = vld [vmem:[#allocation5 + $0x28] sm:$0xff]
    %v114 = vld [vmem:[#allocation5 + $0x30] sm:$0xff]
    %v115 = vld [vmem:[#allocation5 + $0x38] sm:$0xff]
    %v116 = vld [vmem:[#allocation5 + $0x40] sm:$0xff]
    %v117 = vld [vmem:[#allocation5 + $0x48] sm:$0xff]
    %v118 = vld [vmem:[#allocation5 + $0x50] sm:$0xff]
    %v119 = vld [vmem:[#allocation5 + $0x58] sm:$0xff]
    %v120 = vld [vmem:[#allocation5 + $0x60] sm:$0xff]
    %v121 = vld [vmem:[#allocation5 + $0x68] sm:$0xff]
    %v122 = vld [vmem:[#allocation5 + $0x70] sm:$0xff]
    %v123 = vld [vmem:[#allocation5 + $0x78] sm:$0xff]
    %124 = vmatprep.subr.mxu0 0.0
    %125 = vmatpush1.msra.mxu0 %v123
    %126 = vmatprep.subr.mxu0 0.0
    %127 = vmatpush1.msra.mxu0 %v122
    %128 = vmatprep.subr.mxu0 0.0
    %129 = vmatpush1.msra.mxu0 %v121
    %130 = vmatprep.subr.mxu0 0.0
    %131 = vmatpush1.msra.mxu0 %v120
    %132 = vmatprep.subr.mxu0 0.0
    %133 = vmatpush1.msra.mxu0 %v119
    %134 = vmatprep.subr.mxu0 0.0
    %135 = vmatpush1.msra.mxu0 %v118
    %136 = vmatprep.subr.mxu0 0.0
    %137 = vmatpush1.msra.mxu0 %v117
    %138 = vmatprep.subr.mxu0 0.0
    %139 = vmatpush1.msra.mxu0 %v116
    %140 = vmatprep.subr.mxu0 0.0
    %141 = vmatpush1.msra.mxu0 %v115
    %142 = vmatprep.subr.mxu0 0.0
    %143 = vmatpush1.msra.mxu0 %v114
    %144 = vmatprep.subr.mxu0 0.0
    %145 = vmatpush1.msra.mxu0 %v113
    %146 = vmatprep.subr.mxu0 0.0
    %147 = vmatpush1.msra.mxu0 %v112
    %148 = vmatprep.subr.mxu0 0.0
    %149 = vmatpush1.msra.mxu0 %v111
    %150 = vmatprep.subr.mxu0 0.0
    %151 = vmatpush1.msra.mxu0 %v110
    %152 = vmatprep.subr.mxu0 0.0
    %153 = vmatpush1.msra.mxu0 %v109
    %154 = vmatprep.subr.mxu0 0.0
    %155 = vmatpush1.msra.mxu0 %v108
    %156 = vmatprep.subr.mxu0 0.0
    %157 = vmatpush2.msra.mxu0 0.0
    %158 = vmatprep.subr.mxu0 0.0
    %159 = vmatpush2.msra.mxu0 0.0
    %160 = vmatprep.subr.mxu0 0.0
    %161 = vmatpush2.msra.mxu0 0.0
    %162 = vmatprep.subr.mxu0 0.0
    %163 = vmatpush2.msra.mxu0 0.0
    %164 = vmatprep.subr.mxu0 0.0
    %165 = vmatpush2.msra.mxu0 0.0
    %166 = vmatprep.subr.mxu0 0.0
    %167 = vmatpush2.msra.mxu0 0.0
    %168 = vmatprep.subr.mxu0 0.0
    %169 = vmatpush2.msra.mxu0 0.0
    %170 = vmatprep.subr.mxu0 0.0
    %171 = vmatpush2.msra.mxu0 0.0
    %172 = vmatprep.subr.mxu0 0.0
    %173 = vmatpush2.msra.mxu0 0.0
    %174 = vmatprep.subr.mxu0 0.0
    %175 = vmatpush2.msra.mxu0 0.0
    %176 = vmatprep.subr.mxu0 0.0
    %177 = vmatpush2.msra.mxu0 0.0
    %178 = vmatprep.subr.mxu0 0.0
    %179 = vmatpush2.msra.mxu0 0.0
    %180 = vmatprep.subr.mxu0 0.0
    %181 = vmatpush2.msra.mxu0 0.0
    %182 = vmatprep.subr.mxu0 0.0
    %183 = vmatpush2.msra.mxu0 0.0
    %184 = vmatprep.subr.mxu0 0.0
    %185 = vmatpush2.msra.mxu0 0.0
    %186 = vmatprep.subr.mxu0 0.0
    %187 = vmatpush2.msra.mxu0 0.0
    %188 = vmatprep.mubr.f32.mxu0 0.0
    %189 = vmatmul.mubr.f32.gmra.mxu0 %v106
    %v190 = vpop.f32.mrf.mxu0
    %v191 = vadd.f32 0.0, %v190
    %v192 = vpop.f32.mrf.mxu0
    %193 = vmatprep.mubr.f32.mxu0 0.0
    %194 = vmatmul.mubr.f32.gmra.mxu0 %v107
    %v195 = vpop.f32.mrf.mxu0
    %v196 = vadd.f32 0.0, %v195
    %v197 = vpop.f32.mrf.mxu0
    %198 = vdwg.mxu0
    %vm199 = vcmask 97280
    %v201 = vsel %vm199, %v46, 0
    %v204 = vsel %vm199, %v47, 0
    %vm206 = vcmask 1043456
    %v208 = vsel %vm206, %v49, 0
    %210 = vmatprep.subr.mxu0 0.0
    %211 = vmatpush1.msra.mxu0 0.0
    %212 = vmatprep.subr.mxu0 0.0
    %213 = vmatpush1.msra.mxu0 0.0
    %214 = vmatprep.subr.mxu0 0.0
    %215 = vmatpush1.msra.mxu0 0.0
    %216 = vmatprep.subr.mxu0 0.0
    %217 = vmatpush1.msra.mxu0 0.0
    %218 = vmatprep.subr.mxu0 0.0
    %219 = vmatpush1.msra.mxu0 0.0
    %220 = vmatprep.subr.mxu0 0.0
    %221 = vmatpush1.msra.mxu0 0.0
    %222 = vmatprep.subr.mxu0 0.0
    %223 = vmatpush1.msra.mxu0 0.0
    %224 = vmatprep.subr.mxu0 0.0
    %225 = vmatpush1.msra.mxu0 0.0
    %226 = vmatprep.subr.mxu0 0.0
    %227 = vmatpush1.msra.mxu0 0.0
    %228 = vmatprep.subr.mxu0 0.0
    %229 = vmatpush1.msra.mxu0 0.0
    %230 = vmatprep.subr.mxu0 0.0
    %231 = vmatpush1.msra.mxu0 0.0
    %232 = vmatprep.subr.mxu0 0.0
    %233 = vmatpush1.msra.mxu0 0.0
    %234 = vmatprep.subr.mxu0 0.0
    %235 = vmatpush1.msra.mxu0 0.0
    %236 = vmatprep.subr.mxu0 0.0
    %237 = vmatpush1.msra.mxu0 0.0
    %238 = vmatprep.subr.mxu0 0.0
    %239 = vmatpush1.msra.mxu0 %v208
    %240 = vmatprep.subr.mxu0 0.0
    %241 = vmatpush1.msra.mxu0 %v48
    %242 = vmatprep.subr.mxu0 0.0
    %243 = vmatpush2.msra.mxu0 0.0
    %244 = vmatprep.subr.mxu0 0.0
    %245 = vmatpush2.msra.mxu0 0.0
    %246 = vmatprep.subr.mxu0 0.0
    %247 = vmatpush2.msra.mxu0 0.0
    %248 = vmatprep.subr.mxu0 0.0
    %249 = vmatpush2.msra.mxu0 0.0
    %250 = vmatprep.subr.mxu0 0.0
    %251 = vmatpush2.msra.mxu0 0.0
    %252 = vmatprep.subr.mxu0 0.0
    %253 = vmatpush2.msra.mxu0 0.0
    %254 = vmatprep.subr.mxu0 0.0
    %255 = vmatpush2.msra.mxu0 0.0
    %256 = vmatprep.subr.mxu0 0.0
    %257 = vmatpush2.msra.mxu0 0.0
    %258 = vmatprep.subr.mxu0 0.0
    %259 = vmatpush2.msra.mxu0 0.0
    %260 = vmatprep.subr.mxu0 0.0
    %261 = vmatpush2.msra.mxu0 0.0
    %262 = vmatprep.subr.mxu0 0.0
    %263 = vmatpush2.msra.mxu0 0.0
    %264 = vmatprep.subr.mxu0 0.0
    %265 = vmatpush2.msra.mxu0 0.0
    %266 = vmatprep.subr.mxu0 0.0
    %267 = vmatpush2.msra.mxu0 0.0
    %268 = vmatprep.subr.mxu0 0.0
    %269 = vmatpush2.msra.mxu0 0.0
    %270 = vmatprep.subr.mxu0 0.0
    %271 = vmatpush2.msra.mxu0 0.0
    %272 = vmatprep.subr.mxu0 0.0
    %273 = vmatpush2.msra.mxu0 0.0
    %274 = vmatprep.mubr.f32.mxu0 0.0
    %275 = vmatmul.mubr.f32.gmra.mxu0 %v201
    %v276 = vpop.f32.mrf.mxu0
    %v277 = vadd.f32 %v191, %v276
    %v278 = vpop.f32.mrf.mxu0
    %279 = vmatprep.mubr.f32.mxu0 0.0
    %280 = vmatmul.mubr.f32.gmra.mxu0 %v204
    %v281 = vpop.f32.mrf.mxu0
    %v282 = vadd.f32 %v196, %v281
    %v283 = vpop.f32.mrf.mxu0
    %284 = vdwg.mxu0
    %285 = vst [vmem:[#allocation7] sm:$0xff] %v277
    %286 = vst [vmem:[#allocation7 + $0x8] sm:$0xff] %v282
    // Predicated region
    $region26: #{tpu_custom_call.1} parent=1 // pred_check
      _
    $region27: #{tpu_custom_call.1} parent=1 // pred_check_branch
      %288 = sbr.rel (0) target = $region29
    $region28: #{tpu_custom_call.1} parent=1 // pred_region
      %s290 = ssub.s32 256, 256
      %291 = vsyncadd [#allocation4], %s290
      %s292 = sshll.u32 [#allocation7], 4
      %s293 = int_to_ptr.vmem [resolvable:$true] %s292
      %298 = dma.vmem_to_hbm [thread:$0]  %s293, 256, %s4, [#allocation4], 128, 128, 8
    $region29: #{tpu_custom_call.1} parent=1 // pred_fallthru
      _
    // Predicated region
    $region30: #{tpu_custom_call.1} parent=1 // pred_check
      _
    $region31: #{tpu_custom_call.1} parent=1 // pred_check_branch
      %300 = sbr.rel (0) target = $region33
    $region32: #{tpu_custom_call.1} parent=1 // pred_region
      %301 = dma.done [#allocation4], 256
    $region33: #{tpu_custom_call.1} parent=1 // pred_fallthru
      _
    %302 = vsyncpa [#allocation3], 1
    %303 = vsyncpa [#allocation6], 1
    %304 = vsyncpa [#allocation4], 1

</llo_original>
